<compile_context>
chip_gen: v7x
topology: tpu7x:2x2x1
jax: 0.10.0
libtpu: 0.0.40
codegen_flags: <defaults>
</compile_context>

<pallas_src>
import functools

import jax
import jax.numpy as jnp
from jax.experimental import pallas as pl
from jax.experimental.pallas import tpu as pltpu

BN_EPS = 1e-5
_LANE = 128
_SUBLANE = 8
_ROW_ALIGN = 16          # multiple of 16 keeps bf16 sublane packing happy
_MAX_ROW_TILE = 1024


def _round_up(x, m):
    return (x + m - 1) // m * m


# ---------------------------------------------------------------------------
# One-time, trace-time-safe hardware / feature probes
# ---------------------------------------------------------------------------
def _vmem_capacity_bytes():
    try:
        return int(pltpu.get_tpu_info().vmem_capacity_bytes)
    except Exception:
        return 64 * 1024 * 1024          # conservative (v7x per-TC VMEM)


def _is_dual_tensorcore():
    """v7x has 2 TensorCores per chip; v5e/v6e have 1."""
    try:
        return "v7" in jax.devices()[0].device_kind.lower()
    except Exception:
        return False


def _buffered_one_supported():
    """Probe pl.Buffered(1) (single-buffered resident operands).

    Must be called OUTSIDE jit (it runs a tiny eager pallas_call).
    """
    try:
        def k(x_ref, o_ref):
            o_ref[...] = x_ref[...]

        x = jnp.arange(_SUBLANE * _LANE, dtype=jnp.float32).reshape(_SUBLANE, _LANE)
        y = pl.pallas_call(
            k,
            out_shape=jax.ShapeDtypeStruct((2 * _SUBLANE, _LANE), jnp.float32),
            grid=(2,),
            in_specs=[pl.BlockSpec((_SUBLANE, _LANE), lambda i: (0, 0),
                                   pipeline_mode=pl.Buffered(1))],
            out_specs=pl.BlockSpec((_SUBLANE, _LANE), lambda i: (i, 0)),
        )(x)
        return bool(jnp.all(y[:_SUBLANE] == x)) and bool(jnp.all(y[_SUBLANE:] == x))
    except Exception:
        return False


# ---------------------------------------------------------------------------
# Fused kernel: all layers applied to one VMEM-resident activation row-tile.
# refs = (x_ref, w0, b0, w1, b1, ..., w_{L-1}, b_{L-1}, o_ref)
# ---------------------------------------------------------------------------
def _fused_mlp_kernel(*refs, num_layers):
    x_ref = refs[0]
    o_ref = refs[-1]
    h = x_ref[...]                                   # (tm, F0_pad) f32
    for li in range(num_layers):
        w_ref = refs[1 + 2 * li]                     # (Fi_pad, Fo_pad), resident
        b_ref = refs[2 + 2 * li]                     # (1, Fo_pad), resident, f32
        y = jnp.dot(h.astype(w_ref.dtype), w_ref[...],
                    preferred_element_type=jnp.float32)
        y = y + b_ref[...]                           # elementwise tail stays f32
        if li < num_layers - 1:
            y = jnp.maximum(y, 0.0)                  # ReLU; BN folded into next W/b
        h = y
    o_ref[...] = h.astype(o_ref.dtype)


# ---------------------------------------------------------------------------
# Trace-time BN folding + padding + pallas_call plumbing
# ---------------------------------------------------------------------------
def _fold_batchnorm(lins, bns):
    """Fold eval-mode BN (applied after ReLU) into the next layer's W/b."""
    num_layers = len(lins)
    folded = []
    carry_scale = None
    carry_shift = None
    for li in range(num_layers):
        w_t, b = lins[li]
        w_t = w_t.astype(jnp.float32)
        b = b.astype(jnp.float32)
        if carry_scale is not None:
            # a = h*scale + shift  =>  a@W + b == h @ (scale[:,None]*W) + (shift@W + b)
            b = carry_shift @ w_t + b
            w_t = carry_scale[:, None] * w_t
        if li < num_layers - 1:
            gamma, beta, mean, var = bns[li]
            scale = gamma.astype(jnp.float32) * jax.lax.rsqrt(
                var.astype(jnp.float32) + BN_EPS)
            shift = beta.astype(jnp.float32) - mean.astype(jnp.float32) * scale
            carry_scale, carry_shift = scale, shift
        folded.append((w_t, b))
    return folded


def _pad2(w, rows, cols):
    return jnp.pad(w, ((0, rows - w.shape[0]), (0, cols - w.shape[1])))


def mlp_forward(x, lins, bns, *, compute_dtype=jnp.float32,
                single_buffer_weights=False):
    n, f_in = x.shape
    num_layers = len(lins)
    folded = _fold_batchnorm(lins, bns)

    dims = [f_in] + [w.shape[1] for w, _ in folded]
    dims_pad = [_round_up(d, _LANE) for d in dims]          # lane-dense features

    # --- VMEM budgeting (generation-aware) --------------------------------
    wbytes = jnp.dtype(compute_dtype).itemsize
    wt_bufs = 1 if single_buffer_weights else 2
    resident = sum(wt_bufs * (dims_pad[i] * dims_pad[i + 1] * wbytes
                              + dims_pad[i + 1] * 4)
                   for i in range(num_layers))

    vmem_cap = _vmem_capacity_bytes()
    vmem_limit = int(0.85 * vmem_cap)        # leave headroom for internal scratch
    # TODO(synk): if `resident` alone exceeds vmem_limit (very wide hidden dims,
    # esp. on v7x's 64 MiB VMEM), stream the oversized layer's weight over its
    # output-feature dim instead of keeping every weight fully resident.

    # --- Row-tile selection -------------------------------------------------
    # Only the x / out tiles (double-buffered) and the live activation scale
    # with tm, so pick the largest tm the remaining budget allows.
    tile_budget = max(1 << 20, int(0.6 * vmem_limit) - resident)
    bytes_per_row = 4 * (2 * dims_pad[0] + 2 * dims_pad[-1] + 2 * max(dims_pad))
    tm_cap = (tile_budget // bytes_per_row) // _ROW_ALIGN * _ROW_ALIGN
    tm_cap = max(_ROW_ALIGN, min(_MAX_ROW_TILE, tm_cap))
    tm = min(tm_cap, _round_up(n, _ROW_ALIGN))
    if _is_dual_tensorcore() and n > _ROW_ALIGN:
        # keep >=2 grid steps so ("parallel",) can feed both v7x TensorCores
        tm = min(tm, _round_up(pl.cdiv(n, 2), _ROW_ALIGN))

    n_pad = n if n % tm == 0 else _round_up(n, tm)

    # Feature pad for lane density; batch pad only when the tile is ragged.
    x_f32 = x.astype(jnp.float32)
    if n_pad != n or dims_pad[0] != f_in:
        x_in = jnp.pad(x_f32, ((0, n_pad - n), (0, dims_pad[0] - f_in)))
    else:
        x_in = x_f32

    resident_mode = ({"pipeline_mode": pl.Buffered(1)}
                     if single_buffer_weights else {})

    operands = [x_in]
    in_specs = [pl.BlockSpec((tm, dims_pad[0]), lambda i: (i, 0))]
    for li, (w_t, b) in enumerate(folded):
        fi, fo = dims_pad[li], dims_pad[li + 1]
        w_p = _pad2(w_t, fi, fo).astype(compute_dtype)
        b_p = jnp.pad(b, (0, fo - b.shape[0])).reshape(1, fo).astype(jnp.float32)
        operands += [w_p, b_p]
        in_specs += [
            pl.BlockSpec((fi, fo), lambda i: (0, 0), **resident_mode),   # weights
            pl.BlockSpec((1, fo), lambda i: (0, 0), **resident_mode),    # bias
        ]

    out_p = pl.pallas_call(
        functools.partial(_fused_mlp_kernel, num_layers=num_layers),
        out_shape=jax.ShapeDtypeStruct((n_pad, dims_pad[-1]), x.dtype),
        grid=(n_pad // tm,),
        in_specs=in_specs,
        out_specs=pl.BlockSpec((tm, dims_pad[-1]), lambda i: (i, 0)),
        compiler_params=pltpu.CompilerParams(
            dimension_semantics=("parallel",),
            vmem_limit_bytes=vmem_limit),
    )(*operands)

    if n_pad != n or dims_pad[-1] != dims[-1]:
        out_p = out_p[:n, :dims[-1]]
    return out_p


# ---------------------------------------------------------------------------
# Parameter init (deterministic, mimics nn.Linear.reset_parameters bounds)
# ---------------------------------------------------------------------------
def init_mlp_params(key, in_channels, hidden_channels, out_channels, num_layers):
    dims = ([in_channels, out_channels] if num_layers == 1
            else [in_channels] + [hidden_channels] * (num_layers - 1) + [out_channels])
    lins, bns = [], []
    for li in range(num_layers):
        f_in, f_out = dims[li], dims[li + 1]
        key, kw, kb = jax.random.split(key, 3)
        bound = 1.0 / jnp.sqrt(f_in)
        # stored already transposed to (in, out) for x @ W
        w_t = jax.random.uniform(kw, (f_in, f_out), jnp.float32, -bound, bound)
        b = jax.random.uniform(kb, (f_out,), jnp.float32, -bound, bound)
        lins.append((w_t, b))
        if li < num_layers - 1:
            bns.append((jnp.ones((f_out,), jnp.float32),    # gamma
                        jnp.zeros((f_out,), jnp.float32),   # beta
                        jnp.zeros((f_out,), jnp.float32),   # running_mean
                        jnp.ones((f_out,), jnp.float32)))   # running_var
    return lins, bns


# ---------------------------------------------------------------------------
if __name__ == "__main__":
    in_channels, hidden_channels, out_channels, num_layers = 16, 32, 8, 3
    batch = 64

    key = jax.random.PRNGKey(0)
    key, kx = jax.random.split(key)
    x = jax.random.normal(kx, (batch, in_channels), jnp.float32)

    lins, bns = init_mlp_params(key, in_channels, hidden_channels,
                                out_channels, num_layers)

    # Reference in plain JAX (eval-mode semantics, BN applied explicitly).
    ref = x
    for li in range(num_layers - 1):
        w_t, b = lins[li]
        g, be, m, v = bns[li]
        ref = jnp.maximum(
            jnp.dot(ref, w_t, precision=jax.lax.Precision.HIGHEST) + b, 0.0)
        ref = (ref - m) * jax.lax.rsqrt(v + BN_EPS) * g + be
        # dropout: identity in eval mode
    w_t, b = lins[-1]
    ref = jnp.dot(ref, w_t, precision=jax.lax.Precision.HIGHEST) + b

    # Probe single-buffered resident operands OUTSIDE jit.
    sbw = _buffered_one_supported()

    # f32 MXU operands: tight correctness check.
    fwd_f32 = jax.jit(functools.partial(mlp_forward, compute_dtype=jnp.float32,
                                        single_buffer_weights=sbw))
    out_f32 = jax.block_until_ready(fwd_f32(x, lins, bns))
    assert out_f32.shape == (batch, out_channels)
    assert jnp.allclose(out_f32, ref, atol=1e-4, rtol=1e-4), "f32 mismatch vs JAX ref"

    # bf16 MXU operands (recommended prod dtype on v5e/v6e/v7x), f32 accumulation.
    fwd_bf16 = jax.jit(functools.partial(mlp_forward, compute_dtype=jnp.bfloat16,
                                         single_buffer_weights=sbw))
    out_bf16 = jax.block_until_ready(fwd_bf16(x, lins, bns))
    assert out_bf16.shape == (batch, out_channels)
    assert jnp.allclose(out_bf16, ref, atol=5e-2, rtol=5e-2), "bf16 mismatch vs JAX ref"

    print("KERNEL_OK")
</pallas_src>

<mosaic_0001>
module attributes {stable_mosaic.version = 11 : i64} {
  func.func @k(%arg0: i32, %arg1: memref<8x128xf32, #tpu.memory_space<vmem>>, %arg2: memref<8x128xf32, #tpu.memory_space<vmem>>) attributes {dimension_semantics = [#tpu.dimension_semantics<arbitrary>], iteration_bounds = array<i64: 2>, scalar_prefetch = 0 : i64, scratch_operands = 0 : i64, tpu.core_type = #tpu.core_type<tc>, window_params = [{pipeline_mode = #tpu.pipeline_mode<synchronous>, transform_indices = @transform_0, window_bounds = array<i64: 8, 128>}, {transform_indices = @transform_1, window_bounds = array<i64: 8, 128>}]} {
    %c0 = arith.constant 0 : index
    %c0_0 = arith.constant 0 : index
    %0 = vector.load %arg1[%c0, %c0_0] : memref<8x128xf32, #tpu.memory_space<vmem>>, vector<8x128xf32>
    %c0_1 = arith.constant 0 : index
    %c0_2 = arith.constant 0 : index
    %1 = vector.load %arg2[%c0_1, %c0_2] : memref<8x128xf32, #tpu.memory_space<vmem>>, vector<8x128xf32>
    tpu.vector_store %arg2[%c0_1, %c0_2], %0 {strides = array<i32>} : memref<8x128xf32, #tpu.memory_space<vmem>>, vector<8x128xf32>,
    return
  }
  func.func @transform_0(%arg0: i32) -> (i32, i32) {
    %c0_i32 = arith.constant 0 : i32
    %c0_i32_0 = arith.constant 0 : i32
    %c0_i32_1 = arith.constant 0 : i32
    return %c0_i32, %c0_i32_0 : i32, i32
  }
  func.func @transform_1(%arg0: i32) -> (i32, i32) {
    %c0_i32 = arith.constant 0 : i32
    %c0_i32_0 = arith.constant 0 : i32
    return %arg0, %c0_i32 : i32, i32
  }
}

module attributes {stable_mosaic.version = 11 : i64} {
  func.func @_fused_mlp_kernel(%arg0: i32, %arg1: memref<64x128xf32, #tpu.memory_space<vmem>>, %arg2: memref<128x128xf32, #tpu.memory_space<vmem>>, %arg3: memref<1x128xf32, #tpu.memory_space<vmem>>, %arg4: memref<128x128xf32, #tpu.memory_space<vmem>>, %arg5: memref<1x128xf32, #tpu.memory_space<vmem>>, %arg6: memref<128x128xf32, #tpu.memory_space<vmem>>, %arg7: memref<1x128xf32, #tpu.memory_space<vmem>>, %arg8: memref<64x128xf32, #tpu.memory_space<vmem>>) attributes {dimension_semantics = [#tpu.dimension_semantics<parallel>], iteration_bounds = array<i64: 1>, scalar_prefetch = 0 : i64, scratch_operands = 0 : i64, tpu.core_type = #tpu.core_type<tc>, window_params = [{transform_indices = @transform_0, window_bounds = array<i64: 64, 128>}, {pipeline_mode = #tpu.pipeline_mode<synchronous>, transform_indices = @transform_1, window_bounds = array<i64: 128, 128>}, {pipeline_mode = #tpu.pipeline_mode<synchronous>, transform_indices = @transform_2, window_bounds = array<i64: 1, 128>}, {pipeline_mode = #tpu.pipeline_mode<synchronous>, transform_indices = @transform_3, window_bounds = array<i64: 128, 128>}, {pipeline_mode = #tpu.pipeline_mode<synchronous>, transform_indices = @transform_4, window_bounds = array<i64: 1, 128>}, {pipeline_mode = #tpu.pipeline_mode<synchronous>, transform_indices = @transform_5, window_bounds = array<i64: 128, 128>}, {pipeline_mode = #tpu.pipeline_mode<synchronous>, transform_indices = @transform_6, window_bounds = array<i64: 1, 128>}, {transform_indices = @transform_7, window_bounds = array<i64: 64, 128>}]} {
    %c0 = arith.constant 0 : index
    %c0_0 = arith.constant 0 : index
    %0 = vector.load %arg1[%c0, %c0_0] : memref<64x128xf32, #tpu.memory_space<vmem>>, vector<64x128xf32>
    %c0_1 = arith.constant 0 : index
    %c0_2 = arith.constant 0 : index
    %1 = vector.load %arg2[%c0_1, %c0_2] : memref<128x128xf32, #tpu.memory_space<vmem>>, vector<128x128xf32>
    %cst = arith.constant dense<0.000000e+00> : vector<64x128xf32>
    %2 = tpu.matmul %0, %1, %cst {dimension_numbers = #tpu.dot_dimension_numbers<[1], [0], [0], [1], [0, 0, 1, 1], [], []>} : vector<64x128xf32>, vector<128x128xf32>, vector<64x128xf32> -> vector<64x128xf32>
    %c0_3 = arith.constant 0 : index
    %c0_4 = arith.constant 0 : index
    %3 = vector.load %arg3[%c0_3, %c0_4] : memref<1x128xf32, #tpu.memory_space<vmem>>, vector<1x128xf32>
    %4 = vector.broadcast %3 : vector<1x128xf32> to vector<64x128xf32>
    %5 = arith.addf %2, %4 : vector<64x128xf32>
    %cst_5 = arith.constant 0.000000e+00 : f32
    %6 = vector.broadcast %cst_5 : f32 to vector<64x128xf32>
    %7 = arith.maximumf %5, %6 : vector<64x128xf32>
    %c0_6 = arith.constant 0 : index
    %c0_7 = arith.constant 0 : index
    %8 = vector.load %arg4[%c0_6, %c0_7] : memref<128x128xf32, #tpu.memory_space<vmem>>, vector<128x128xf32>
    %cst_8 = arith.constant dense<0.000000e+00> : vector<64x128xf32>
    %9 = tpu.matmul %7, %8, %cst_8 {dimension_numbers = #tpu.dot_dimension_numbers<[1], [0], [0], [1], [0, 0, 1, 1], [], []>} : vector<64x128xf32>, vector<128x128xf32>, vector<64x128xf32> -> vector<64x128xf32>
    %c0_9 = arith.constant 0 : index
    %c0_10 = arith.constant 0 : index
    %10 = vector.load %arg5[%c0_9, %c0_10] : memref<1x128xf32, #tpu.memory_space<vmem>>, vector<1x128xf32>
    %11 = vector.broadcast %10 : vector<1x128xf32> to vector<64x128xf32>
    %12 = arith.addf %9, %11 : vector<64x128xf32>
    %cst_11 = arith.constant 0.000000e+00 : f32
    %13 = vector.broadcast %cst_11 : f32 to vector<64x128xf32>
    %14 = arith.maximumf %12, %13 : vector<64x128xf32>
    %c0_12 = arith.constant 0 : index
    %c0_13 = arith.constant 0 : index
    %15 = vector.load %arg6[%c0_12, %c0_13] : memref<128x128xf32, #tpu.memory_space<vmem>>, vector<128x128xf32>
    %cst_14 = arith.constant dense<0.000000e+00> : vector<64x128xf32>
    %16 = tpu.matmul %14, %15, %cst_14 {dimension_numbers = #tpu.dot_dimension_numbers<[1], [0], [0], [1], [0, 0, 1, 1], [], []>} : vector<64x128xf32>, vector<128x128xf32>, vector<64x128xf32> -> vector<64x128xf32>
    %c0_15 = arith.constant 0 : index
    %c0_16 = arith.constant 0 : index
    %17 = vector.load %arg7[%c0_15, %c0_16] : memref<1x128xf32, #tpu.memory_space<vmem>>, vector<1x128xf32>
    %18 = vector.broadcast %17 : vector<1x128xf32> to vector<64x128xf32>
    %19 = arith.addf %16, %18 : vector<64x128xf32>
    %c0_17 = arith.constant 0 : index
    %c0_18 = arith.constant 0 : index
    %20 = vector.load %arg8[%c0_17, %c0_18] : memref<64x128xf32, #tpu.memory_space<vmem>>, vector<64x128xf32>
    tpu.vector_store %arg8[%c0_17, %c0_18], %19 {strides = array<i32>} : memref<64x128xf32, #tpu.memory_space<vmem>>, vector<64x128xf32>,
    return
  }
  func.func @transform_0(%arg0: i32) -> (i32, i32) {
    %c0_i32 = arith.constant 0 : i32
    %c0_i32_0 = arith.constant 0 : i32
    return %arg0, %c0_i32 : i32, i32
  }
  func.func @transform_1(%arg0: i32) -> (i32, i32) {
    %c0_i32 = arith.constant 0 : i32
    %c0_i32_0 = arith.constant 0 : i32
    %c0_i32_1 = arith.constant 0 : i32
    return %c0_i32, %c0_i32_0 : i32, i32
  }
  func.func @transform_2(%arg0: i32) -> (i32, i32) {
    %c0_i32 = arith.constant 0 : i32
    %c0_i32_0 = arith.constant 0 : i32
    %c0_i32_1 = arith.constant 0 : i32
    return %c0_i32, %c0_i32_0 : i32, i32
  }
  func.func @transform_3(%arg0: i32) -> (i32, i32) {
    %c0_i32 = arith.constant 0 : i32
    %c0_i32_0 = arith.constant 0 : i32
    %c0_i32_1 = arith.constant 0 : i32
    return %c0_i32, %c0_i32_0 : i32, i32
  }
  func.func @transform_4(%arg0: i32) -> (i32, i32) {
    %c0_i32 = arith.constant 0 : i32
    %c0_i32_0 = arith.constant 0 : i32
    %c0_i32_1 = arith.constant 0 : i32
    return %c0_i32, %c0_i32_0 : i32, i32
  }
  func.func @transform_5(%arg0: i32) -> (i32, i32) {
    %c0_i32 = arith.constant 0 : i32
    %c0_i32_0 = arith.constant 0 : i32
    %c0_i32_1 = arith.constant 0 : i32
    return %c0_i32, %c0_i32_0 : i32, i32
  }
  func.func @transform_6(%arg0: i32) -> (i32, i32) {
    %c0_i32 = arith.constant 0 : i32
    %c0_i32_0 = arith.constant 0 : i32
    %c0_i32_1 = arith.constant 0 : i32
    return %c0_i32, %c0_i32_0 : i32, i32
  }
  func.func @transform_7(%arg0: i32) -> (i32, i32) {
    %c0_i32 = arith.constant 0 : i32
    %c0_i32_0 = arith.constant 0 : i32
    return %arg0, %c0_i32 : i32, i32
  }
}

</mosaic_0001>

<llo_original>
// kernel: tpu_custom_call.1
$region0: #{tpu_custom_call.1}
  #allocation0 [shape = 'u32[]', space=smem, size = 0x4, offset = 0x4, fixed_abs, tag = 'smem constant byte address 0x4 - core index']
  #allocation1 [shape = 'u32[144,128]{1,0:T(1,128)}', space=vmem, size = 0x12000, scoped, tag = 'internal scratch']
  %s0 = inlined_call_operand.hbm [shape: f32[8,128], index: 0, kind: input, shape index: {}]
  %s1 = inlined_call_operand.hbm [shape: f32[16,128], index: 1, kind: output, shape index: {}]
  %s2 = sld [smem:[#allocation0]]
  $region41: #{tpu_custom_call.1} parent=0
    _
  %s4 = ssub.s32 1, %s2
  %s5 = scalar_select 0, %s4, %s2
  $region1: #{tpu_custom_call.1} parent=0
    #allocation2 [shape = 'u8[4096]{0}', space=vmem, size = 0x1000, scoped, tag = 'input window, operand 0, single buffered']
    #allocation3 [shape = 's32[2]{0}', space=sflag, size = 0x8, scoped, tag = 'scoped memory for tpu_custom_call.1']
    #allocation4 [shape = 's32[2]{0}', space=sflag, size = 0x8, scoped, tag = 'scoped memory for tpu_custom_call.1']
    #allocation5 [shape = 'u8[8192]{0}', space=vmem, size = 0x2000, scoped, tag = 'output window, operand 0']
    %6 = vsyncpa [#allocation3], 0
    %7 = vsyncpa [#allocation4], 0
    %s8 = scalar_lea.sflag [#allocation4], 1
    %9 = vsyncpa %s8, 0
    loop: start=0, step=1, limit=4
    $region2: #{tpu_custom_call.1} parent=1 // loop_pre_header
      _
    $region3: #{tpu_custom_call.1} parent=1 // loop_header
      %s11 = sphi 0, %s15
      %p12 = scmp.ge.s32.totalorder %s11, 4
      %s19 = sphi 0, %s19
      %s21 = sphi 0, %s19
      %s22 = sphi 0, %s21
      %s36 = sphi 0, %s22
      %s42 = sphi 0, %s44
      %s45 = sphi 0, %s42
      %s46 = sphi 0, %s45
      %s62 = sphi 0, %s46
    $region4: #{tpu_custom_call.1} parent=1 // loop_header_branch
      %14 = sbr.rel (%p12) target = $region8
    $region5: #{tpu_custom_call.1} parent=1 // loop_body
      %s16 = ssub.s32 %s11, 1
      %s17 = ssub.s32 %s11, 2
      %s18 = sadd.s32 %s11, 1
      %s20 = sadd.s32 %s19, 1
      %p23 = scmp.eq.s32.totalorder %s11, 1
      %p24 = scmp.ne.s32.totalorder %s19, %s21
      %p25 = scmp.eq.s32.totalorder %s11, 0
      %p26 = por %p24, %p25
      %p27 = scmp.ne.s32.totalorder %s19, %s21
      %p28 = scmp.eq.s32.totalorder %s16, 1
      %p29 = por %p27, %p28
      %p30 = scmp.ne.s32.totalorder %s21, %s22
      %p31 = scmp.eq.s32.totalorder %s16, 0
      %p32 = por %p30, %p31
      %p33 = scmp.ne.s32.totalorder %s21, %s22
      %p34 = scmp.eq.s32.totalorder %s17, 1
      %p35 = por %p33, %p34
      %p37 = scmp.ne.s32.totalorder %s22, %s36
      %p38 = scmp.eq.s32.totalorder %s17, 0
      %p39 = por %p37, %p38
      %s40 = ssub.s32 %s11, %s18
      %p41 = scmp.eq.s32.totalorder %s40, 0
      %s43 = sadd.s32 %s42, 1
      %s44 = scalar_select %p41, %s42, %s43
      %p47 = pneg %p41
      %p48 = scmp.eq.s32.totalorder %s11, 1
      %p49 = por %p47, %p48
      %p50 = scmp.ne.s32.totalorder %s42, %s45
      %p51 = scmp.eq.s32.totalorder %s11, 0
      %p52 = por %p50, %p51
      %p53 = scmp.ne.s32.totalorder %s42, %s45
      %p54 = scmp.eq.s32.totalorder %s16, 1
      %p55 = por %p53, %p54
      %p56 = scmp.ne.s32.totalorder %s45, %s46
      %p57 = scmp.eq.s32.totalorder %s16, 0
      %p58 = por %p56, %p57
      %p59 = scmp.ne.s32.totalorder %s45, %s46
      %p60 = scmp.eq.s32.totalorder %s17, 1
      %p61 = por %p59, %p60
      %p63 = scmp.ne.s32.totalorder %s46, %s62
      %p64 = scmp.eq.s32.totalorder %s17, 0
      %p65 = por %p63, %p64
      %p66 = scmp.le.s32.totalorder 1, %s11
      %p67 = scmp.lt.s32.totalorder %s11, 3
      %p68 = pnand %p66, %p67
      %p69 = pneg %p68
      // Predicated region
      $region9: #{tpu_custom_call.1} parent=5 // pred_check
        _
      $region10: #{tpu_custom_call.1} parent=5 // pred_check_branch
        %71 = sbr.rel (%p68) target = $region12
      $region11: #{tpu_custom_call.1} parent=5 // pred_region
        %s72 = ssub.s32 %s11, 1
        // Predicated region
        $region13: #{tpu_custom_call.1} parent=11 // pred_check
          %p73 = pneg %p32
        $region14: #{tpu_custom_call.1} parent=11 // pred_check_branch
          %75 = sbr.rel (%p73) target = $region16
        $region15: #{tpu_custom_call.1} parent=11 // pred_region
          %s77 = ssub.s32 128, 128
          %78 = vsyncadd [#allocation3], %s77
          %s80 = sshll.u32 [#allocation2], 4
          %s81 = int_to_ptr.vmem [resolvable:$true] %s80
          %83 = dma.hbm_to_vmem [thread:$0]  %s0, 128, %s81, [#allocation3]
        $region16: #{tpu_custom_call.1} parent=11 // pred_fallthru
          _
      $region12: #{tpu_custom_call.1} parent=5 // pred_fallthru
        _
      %p84 = scmp.lt.s32.totalorder %s11, 2
      // Predicated region
      $region17: #{tpu_custom_call.1} parent=5 // pred_check
        %p85 = pneg %p84
      $region18: #{tpu_custom_call.1} parent=5 // pred_check_branch
        %87 = sbr.rel (%p85) target = $region20
      $region19: #{tpu_custom_call.1} parent=5 // pred_region
        _
      $region20: #{tpu_custom_call.1} parent=5 // pred_fallthru
        _
      %p88 = scmp.le.s32.totalorder 1, %s11
      %p89 = scmp.lt.s32.totalorder %s11, 3
      %p90 = pnand %p88, %p89
      %p91 = pneg %p90
      // Predicated region
      $region21: #{tpu_custom_call.1} parent=5 // pred_check
        _
      $region22: #{tpu_custom_call.1} parent=5 // pred_check_branch
        %93 = sbr.rel (%p90) target = $region24
      $region23: #{tpu_custom_call.1} parent=5 // pred_region
        %s94 = ssub.s32 %s11, 1
        // Predicated region
        $region25: #{tpu_custom_call.1} parent=23 // pred_check
          %p95 = pneg %p32
        $region26: #{tpu_custom_call.1} parent=23 // pred_check_branch
          %97 = sbr.rel (%p95) target = $region28
        $region27: #{tpu_custom_call.1} parent=23 // pred_region
          %98 = dma.done [#allocation3], 128
        $region28: #{tpu_custom_call.1} parent=23 // pred_fallthru
          _
        %p99 = pneg %p32
        %p100 = pneg %p29
        %p101 = pneg %p58
        %p102 = pneg %p55
        %s103 = sand.u32 %s45, 1
        %s104 = scalar_lea.sflag [#allocation4], %s103
        %s105 = sand.u32 %s45, 1
        %s106 = smul.addr %s105, 8
        %s107 = scalar_lea.vmem [#allocation5], %s106
        %v108 = vld [vmem:[#allocation2] sm:$0xff]
        %109 = vst [vmem:[%s107] sm:$0xff] %v108
        %s110 = sand.u32 %s45, 1
        %s111 = scalar_lea.sflag [#allocation4], %s110
        %s112 = sand.u32 %s45, 1
        %s113 = smul.addr %s112, 8
        %s114 = scalar_lea.vmem [#allocation5], %s113
        // Predicated region
        $region29: #{tpu_custom_call.1} parent=23 // pred_check
          %p115 = pneg %p55
        $region30: #{tpu_custom_call.1} parent=23 // pred_check_branch
          %117 = sbr.rel (%p115) target = $region32
        $region31: #{tpu_custom_call.1} parent=23 // pred_region
          %s119 = ssub.s32 128, 128
          %120 = vsyncadd %s111, %s119
          %s121 = smul.addr %s16, 128
          %s122 = scalar_lea.hbm %s1, %s121
          %s124 = sshll.u32 %s114, 4
          %s125 = int_to_ptr.vmem [resolvable:$true] %s124
          %127 = dma.vmem_to_hbm [thread:$0]  %s125, 128, %s122, %s111
        $region32: #{tpu_custom_call.1} parent=23 // pred_fallthru
          _
      $region24: #{tpu_custom_call.1} parent=5 // pred_fallthru
        _
      %p128 = scmp.le.s32.totalorder 2, %s11
      // Predicated region
      $region33: #{tpu_custom_call.1} parent=5 // pred_check
        %p129 = pneg %p128
      $region34: #{tpu_custom_call.1} parent=5 // pred_check_branch
        %131 = sbr.rel (%p129) target = $region36
      $region35: #{tpu_custom_call.1} parent=5 // pred_region
        %s132 = ssub.s32 %s11, 2
        // Predicated region
        $region37: #{tpu_custom_call.1} parent=35 // pred_check
          %p133 = pneg %p61
        $region38: #{tpu_custom_call.1} parent=35 // pred_check_branch
          %135 = sbr.rel (%p133) target = $region40
        $region39: #{tpu_custom_call.1} parent=35 // pred_region
          %s136 = sand.u32 %s46, 1
          %s137 = scalar_lea.sflag [#allocation4], %s136
          %s138 = sand.u32 %s46, 1
          %s139 = smul.addr %s138, 8
          %s140 = scalar_lea.vmem [#allocation5], %s139
          %141 = dma.done %s137, 128
        $region40: #{tpu_custom_call.1} parent=35 // pred_fallthru
          _
      $region36: #{tpu_custom_call.1} parent=5 // pred_fallthru
        _
    $region6: #{tpu_custom_call.1} parent=1 // loop_footer
      %s15 = sadd.s32 1, %s11
    $region7: #{tpu_custom_call.1} parent=1 // loop_footer_branch
      %10 = sbr.rel target = $region3
    $region8: #{tpu_custom_call.1} parent=1 // loop_exit
      _
    %142 = vsyncpa [#allocation3], 1
    %s143 = scalar_lea.sflag [#allocation3], 1
    %144 = vsyncpa %s143, 1
    %145 = vsyncpa [#allocation4], 1
    %s146 = scalar_lea.sflag [#allocation4], 1
    %147 = vsyncpa %s146, 1

// kernel: mlp_forward.1
$region0: #{mlp_forward.1}
  #allocation0 [shape = 'u32[]', space=smem, size = 0x4, offset = 0x4, fixed_abs, tag = 'smem constant byte address 0x4 - core index']
  #allocation1 [shape = 'u32[144,128]{1,0:T(1,128)}', space=vmem, size = 0x12000, scoped, tag = 'internal scratch']
  %s0 = inlined_call_operand.vmem [shape: f32[64,128], index: 0, kind: input, shape index: {}]
  %s1 = inlined_call_operand.vmem [shape: f32[128,128], index: 1, kind: input, shape index: {}]
  %s2 = inlined_call_operand.vmem [shape: f32[1,128], index: 2, kind: input, shape index: {}]
  %s3 = inlined_call_operand.vmem [shape: f32[128,128], index: 3, kind: input, shape index: {}]
  %s4 = inlined_call_operand.vmem [shape: f32[1,128], index: 4, kind: input, shape index: {}]
  %s5 = inlined_call_operand.vmem [shape: f32[128,128], index: 5, kind: input, shape index: {}]
  %s6 = inlined_call_operand.vmem [shape: f32[1,128], index: 6, kind: input, shape index: {}]
  %s7 = inlined_call_operand.vmem [shape: f32[64,128], index: 7, kind: output, shape index: {}]
  %s8 = sld [smem:[#allocation0]]
  $region38: #{mlp_forward.1} parent=0
    _
  %s10 = ssub.s32 1, %s8
  %s11 = scalar_select 0, %s10, %s8
  // Predicated region
  $region2: #{mlp_forward.1} parent=0 // pred_check
    _
  $region3: #{mlp_forward.1} parent=0 // pred_check_branch
    %13 = sbr.rel (0) target = $region5
  $region4: #{mlp_forward.1} parent=0 // pred_region
    _
  $region5: #{mlp_forward.1} parent=0 // pred_fallthru
    _
  // Predicated region
  $region6: #{mlp_forward.1} parent=0 // pred_check
    _
  $region7: #{mlp_forward.1} parent=0 // pred_check_branch
    %15 = sbr.rel (0) target = $region9
  $region8: #{mlp_forward.1} parent=0 // pred_region
    _
  $region9: #{mlp_forward.1} parent=0 // pred_fallthru
    _
  // Predicated region
  $region10: #{mlp_forward.1} parent=0 // pred_check
    _
  $region11: #{mlp_forward.1} parent=0 // pred_check_branch
    %17 = sbr.rel (0) target = $region13
  $region12: #{mlp_forward.1} parent=0 // pred_region
    _
  $region13: #{mlp_forward.1} parent=0 // pred_fallthru
    _
  // Predicated region
  $region14: #{mlp_forward.1} parent=0 // pred_check
    _
  $region15: #{mlp_forward.1} parent=0 // pred_check_branch
    %19 = sbr.rel (0) target = $region17
  $region16: #{mlp_forward.1} parent=0 // pred_region
    _
  $region17: #{mlp_forward.1} parent=0 // pred_fallthru
    _
  // Predicated region
  $region18: #{mlp_forward.1} parent=0 // pred_check
    _
  $region19: #{mlp_forward.1} parent=0 // pred_check_branch
    %21 = sbr.rel (0) target = $region21
  $region20: #{mlp_forward.1} parent=0 // pred_region
    _
  $region21: #{mlp_forward.1} parent=0 // pred_fallthru
    _
  // Predicated region
  $region22: #{mlp_forward.1} parent=0 // pred_check
    _
  $region23: #{mlp_forward.1} parent=0 // pred_check_branch
    %23 = sbr.rel (0) target = $region25
  $region24: #{mlp_forward.1} parent=0 // pred_region
    _
  $region25: #{mlp_forward.1} parent=0 // pred_fallthru
    _
  // Predicated region
  $region26: #{mlp_forward.1} parent=0 // pred_check
    _
  $region27: #{mlp_forward.1} parent=0 // pred_check_branch
    %25 = sbr.rel (0) target = $region29
  $region28: #{mlp_forward.1} parent=0 // pred_region
    _
  $region29: #{mlp_forward.1} parent=0 // pred_fallthru
    _
  %v26 = vld [vmem:[%s0] sm:$0xff]
  %v27 = vld [vmem:[%s0 + $0x8] sm:$0xff]
  %v28 = vld [vmem:[%s0 + $0x10] sm:$0xff]
  %v29 = vld [vmem:[%s0 + $0x18] sm:$0xff]
  %v30 = vld [vmem:[%s0 + $0x20] sm:$0xff]
  %v31 = vld [vmem:[%s0 + $0x28] sm:$0xff]
  %v32 = vld [vmem:[%s0 + $0x30] sm:$0xff]
  %v33 = vld [vmem:[%s0 + $0x38] sm:$0xff]
  %v34 = vld [vmem:[%s1] sm:$0xff]
  %v35 = vld [vmem:[%s1 + $0x8] sm:$0xff]
  %v36 = vld [vmem:[%s1 + $0x10] sm:$0xff]
  %v37 = vld [vmem:[%s1 + $0x18] sm:$0xff]
  %v38 = vld [vmem:[%s1 + $0x20] sm:$0xff]
  %v39 = vld [vmem:[%s1 + $0x28] sm:$0xff]
  %v40 = vld [vmem:[%s1 + $0x30] sm:$0xff]
  %v41 = vld [vmem:[%s1 + $0x38] sm:$0xff]
  %v42 = vld [vmem:[%s1 + $0x40] sm:$0xff]
  %v43 = vld [vmem:[%s1 + $0x48] sm:$0xff]
  %v44 = vld [vmem:[%s1 + $0x50] sm:$0xff]
  %v45 = vld [vmem:[%s1 + $0x58] sm:$0xff]
  %v46 = vld [vmem:[%s1 + $0x60] sm:$0xff]
  %v47 = vld [vmem:[%s1 + $0x68] sm:$0xff]
  %v48 = vld [vmem:[%s1 + $0x70] sm:$0xff]
  %v49 = vld [vmem:[%s1 + $0x78] sm:$0xff]
  %v50 = vld [vmem:[%s2] sm:$0x1]
  %v52 = vlaneseq
  %v53 = vshrl.u32 %v52, 7
  %v54 = vsub.s32 0, %v53
  %v55 = vrot.slane %v50, %v54
  %57 = vmatprep.subr.mxu0 0.0
  %58 = vmatpush1.msra.mxu0 %v34
  %59 = vmatprep.subr.mxu0 0.0
  %60 = vmatpush1.msra.mxu0 %v35
  %61 = vmatprep.subr.mxu0 0.0
  %62 = vmatpush1.msra.mxu0 %v36
  %63 = vmatprep.subr.mxu0 0.0
  %64 = vmatpush1.msra.mxu0 %v37
  %65 = vmatprep.subr.mxu0 0.0
  %66 = vmatpush1.msra.mxu0 %v38
  %67 = vmatprep.subr.mxu0 0.0
  %68 = vmatpush1.msra.mxu0 %v39
  %69 = vmatprep.subr.mxu0 0.0
  %70 = vmatpush1.msra.mxu0 %v40
  %71 = vmatprep.subr.mxu0 0.0
  %72 = vmatpush1.msra.mxu0 %v41
  %73 = vmatprep.subr.mxu0 0.0
  %74 = vmatpush1.msra.mxu0 %v42
  %75 = vmatprep.subr.mxu0 0.0
  %76 = vmatpush1.msra.mxu0 %v43
  %77 = vmatprep.subr.mxu0 0.0
  %78 = vmatpush1.msra.mxu0 %v44
  %79 = vmatprep.subr.mxu0 0.0
  %80 = vmatpush1.msra.mxu0 %v45
  %81 = vmatprep.subr.mxu0 0.0
  %82 = vmatpush1.msra.mxu0 %v46
  %83 = vmatprep.subr.mxu0 0.0
  %84 = vmatpush1.msra.mxu0 %v47
  %85 = vmatprep.subr.mxu0 0.0
  %86 = vmatpush1.msra.mxu0 %v48
  %87 = vmatprep.subr.mxu0 0.0
  %88 = vmatpush1.msra.mxu0 %v49
  %89 = vmatprep.subr.mxu0 0.0
  %90 = vmatpush1.msra.mxu0 0.0
  %91 = vmatprep.subr.mxu0 0.0
  %92 = vmatpush1.msra.mxu0 0.0
  %93 = vmatprep.subr.mxu0 0.0
  %94 = vmatpush1.msra.mxu0 0.0
  %95 = vmatprep.subr.mxu0 0.0
  %96 = vmatpush1.msra.mxu0 0.0
  %97 = vmatprep.subr.mxu0 0.0
  %98 = vmatpush1.msra.mxu0 0.0
  %99 = vmatprep.subr.mxu0 0.0
  %100 = vmatpush1.msra.mxu0 0.0
  %101 = vmatprep.subr.mxu0 0.0
  %102 = vmatpush1.msra.mxu0 0.0
  %103 = vmatprep.subr.mxu0 0.0
  %104 = vmatpush1.msra.mxu0 0.0
  %105 = vmatprep.subr.mxu0 0.0
  %106 = vmatpush1.msra.mxu0 0.0
  %107 = vmatprep.subr.mxu0 0.0
  %108 = vmatpush1.msra.mxu0 0.0
  %109 = vmatprep.subr.mxu0 0.0
  %110 = vmatpush1.msra.mxu0 0.0
  %111 = vmatprep.subr.mxu0 0.0
  %112 = vmatpush1.msra.mxu0 0.0
  %113 = vmatprep.subr.mxu0 0.0
  %114 = vmatpush1.msra.mxu0 0.0
  %115 = vmatprep.subr.mxu0 0.0
  %116 = vmatpush1.msra.mxu0 0.0
  %117 = vmatprep.subr.mxu0 0.0
  %118 = vmatpush1.msra.mxu0 0.0
  %119 = vmatprep.subr.mxu0 0.0
  %120 = vmatpush1.msra.mxu0 0.0
  %121 = vmatprep.mubr.f32.mxu0 0.0
  %122 = vmatmul.mubr.f32.gmra.mrb[0].mxu0 %v26
  %v123 = vpop.f32.mrb[0].mxu0
  %v124 = vadd.f32 %v55, %v123
  %v125 = vpop.f32.mrb[0].mxu0
  %126 = vmatprep.mubr.f32.mxu0 0.0
  %127 = vmatmul.mubr.f32.gmra.mrb[0].mxu0 %v27
  %v128 = vpop.f32.mrb[0].mxu0
  %v129 = vadd.f32 %v55, %v128
  %v130 = vpop.f32.mrb[0].mxu0
  %131 = vmatprep.mubr.f32.mxu0 0.0
  %132 = vmatmul.mubr.f32.gmra.mrb[0].mxu0 %v28
  %v133 = vpop.f32.mrb[0].mxu0
  %v134 = vadd.f32 %v55, %v133
  %v135 = vpop.f32.mrb[0].mxu0
  %136 = vmatprep.mubr.f32.mxu0 0.0
  %137 = vmatmul.mubr.f32.gmra.mrb[0].mxu0 %v29
  %v138 = vpop.f32.mrb[0].mxu0
  %v139 = vadd.f32 %v55, %v138
  %v140 = vpop.f32.mrb[0].mxu0
  %141 = vmatprep.mubr.f32.mxu0 0.0
  %142 = vmatmul.mubr.f32.gmra.mrb[0].mxu0 %v30
  %v143 = vpop.f32.mrb[0].mxu0
  %v144 = vadd.f32 %v55, %v143
  %v145 = vpop.f32.mrb[0].mxu0
  %146 = vmatprep.mubr.f32.mxu0 0.0
  %147 = vmatmul.mubr.f32.gmra.mrb[0].mxu0 %v31
  %v148 = vpop.f32.mrb[0].mxu0
  %v149 = vadd.f32 %v55, %v148
  %v150 = vpop.f32.mrb[0].mxu0
  %151 = vmatprep.mubr.f32.mxu0 0.0
  %152 = vmatmul.mubr.f32.gmra.mrb[0].mxu0 %v32
  %v153 = vpop.f32.mrb[0].mxu0
  %v154 = vadd.f32 %v55, %v153
  %v155 = vpop.f32.mrb[0].mxu0
  %156 = vmatprep.mubr.f32.mxu0 0.0
  %157 = vmatmul.mubr.f32.gmra.mrb[0].mxu0 %v33
  %v158 = vpop.f32.mrb[0].mxu0
  %v159 = vadd.f32 %v55, %v158
  %v160 = vpop.f32.mrb[0].mxu0
  %161 = vdwg.mxu0
  %v162 = vmax.f32 %v124, 0.0
  %v163 = vmax.f32 %v129, 0.0
  %v164 = vmax.f32 %v134, 0.0
  %v165 = vmax.f32 %v139, 0.0
  %v166 = vmax.f32 %v144, 0.0
  %v167 = vmax.f32 %v149, 0.0
  %v168 = vmax.f32 %v154, 0.0
  %v169 = vmax.f32 %v159, 0.0
  %v170 = vld [vmem:[%s3] sm:$0xff]
  %v171 = vld [vmem:[%s3 + $0x8] sm:$0xff]
  %v172 = vld [vmem:[%s3 + $0x10] sm:$0xff]
  %v173 = vld [vmem:[%s3 + $0x18] sm:$0xff]
  %v174 = vld [vmem:[%s3 + $0x20] sm:$0xff]
  %v175 = vld [vmem:[%s3 + $0x28] sm:$0xff]
  %v176 = vld [vmem:[%s3 + $0x30] sm:$0xff]
  %v177 = vld [vmem:[%s3 + $0x38] sm:$0xff]
  %v178 = vld [vmem:[%s3 + $0x40] sm:$0xff]
  %v179 = vld [vmem:[%s3 + $0x48] sm:$0xff]
  %v180 = vld [vmem:[%s3 + $0x50] sm:$0xff]
  %v181 = vld [vmem:[%s3 + $0x58] sm:$0xff]
  %v182 = vld [vmem:[%s3 + $0x60] sm:$0xff]
  %v183 = vld [vmem:[%s3 + $0x68] sm:$0xff]
  %v184 = vld [vmem:[%s3 + $0x70] sm:$0xff]
  %v185 = vld [vmem:[%s3 + $0x78] sm:$0xff]
  %v186 = vld [vmem:[%s4] sm:$0x1]
  %v188 = vlaneseq
  %v189 = vshrl.u32 %v188, 7
  %v190 = vsub.s32 0, %v189
  %v191 = vrot.slane %v186, %v190
  %193 = vmatprep.subr.mxu0 0.0
  %194 = vmatpush1.msra.mxu0 %v170
  %195 = vmatprep.subr.mxu0 0.0
  %196 = vmatpush1.msra.mxu0 %v171
  %197 = vmatprep.subr.mxu0 0.0
  %198 = vmatpush1.msra.mxu0 %v172
  %199 = vmatprep.subr.mxu0 0.0
  %200 = vmatpush1.msra.mxu0 %v173
  %201 = vmatprep.subr.mxu0 0.0
  %202 = vmatpush1.msra.mxu0 %v174
  %203 = vmatprep.subr.mxu0 0.0
  %204 = vmatpush1.msra.mxu0 %v175
  %205 = vmatprep.subr.mxu0 0.0
  %206 = vmatpush1.msra.mxu0 %v176
  %207 = vmatprep.subr.mxu0 0.0
  %208 = vmatpush1.msra.mxu0 %v177
  %209 = vmatprep.subr.mxu0 0.0
  %210 = vmatpush1.msra.mxu0 %v178
  %211 = vmatprep.subr.mxu0 0.0
  %212 = vmatpush1.msra.mxu0 %v179
  %213 = vmatprep.subr.mxu0 0.0
  %214 = vmatpush1.msra.mxu0 %v180
  %215 = vmatprep.subr.mxu0 0.0
  %216 = vmatpush1.msra.mxu0 %v181
  %217 = vmatprep.subr.mxu0 0.0
  %218 = vmatpush1.msra.mxu0 %v182
  %219 = vmatprep.subr.mxu0 0.0
  %220 = vmatpush1.msra.mxu0 %v183
  %221 = vmatprep.subr.mxu0 0.0
  %222 = vmatpush1.msra.mxu0 %v184
  %223 = vmatprep.subr.mxu0 0.0
  %224 = vmatpush1.msra.mxu0 %v185
  %225 = vmatprep.subr.mxu0 0.0
  %226 = vmatpush1.msra.mxu0 0.0
  %227 = vmatprep.subr.mxu0 0.0
  %228 = vmatpush1.msra.mxu0 0.0
  %229 = vmatprep.subr.mxu0 0.0
  %230 = vmatpush1.msra.mxu0 0.0
  %231 = vmatprep.subr.mxu0 0.0
  %232 = vmatpush1.msra.mxu0 0.0
  %233 = vmatprep.subr.mxu0 0.0
  %234 = vmatpush1.msra.mxu0 0.0
  %235 = vmatprep.subr.mxu0 0.0
  %236 = vmatpush1.msra.mxu0 0.0
  %237 = vmatprep.subr.mxu0 0.0
  %238 = vmatpush1.msra.mxu0 0.0
  %239 = vmatprep.subr.mxu0 0.0
  %240 = vmatpush1.msra.mxu0 0.0
  %241 = vmatprep.subr.mxu0 0.0
  %242 = vmatpush1.msra.mxu0 0.0
  %243 = vmatprep.subr.mxu0 0.0
  %244 = vmatpush1.msra.mxu0 0.0
  %245 = vmatprep.subr.mxu0 0.0
  %246 = vmatpush1.msra.mxu0 0.0
  %247 = vmatprep.subr.mxu0 0.0
  %248 = vmatpush1.msra.mxu0 0.0
  %249 = vmatprep.subr.mxu0 0.0
  %250 = vmatpush1.msra.mxu0 0.0
  %251 = vmatprep.subr.mxu0 0.0
  %252 = vmatpush1.msra.mxu0 0.0
  %253 = vmatprep.subr.mxu0 0.0
  %254 = vmatpush1.msra.mxu0 0.0
  %255 = vmatprep.subr.mxu0 0.0
  %256 = vmatpush1.msra.mxu0 0.0
  %257 = vmatprep.mubr.f32.mxu0 0.0
  %258 = vmatmul.mubr.f32.gmra.mrb[0].mxu0 %v162
  %v259 = vpop.f32.mrb[0].mxu0
  %v260 = vadd.f32 %v191, %v259
  %v261 = vpop.f32.mrb[0].mxu0
  %262 = vmatprep.mubr.f32.mxu0 0.0
  %263 = vmatmul.mubr.f32.gmra.mrb[0].mxu0 %v163
  %v264 = vpop.f32.mrb[0].mxu0
  %v265 = vadd.f32 %v191, %v264
  %v266 = vpop.f32.mrb[0].mxu0
  %267 = vmatprep.mubr.f32.mxu0 0.0
  %268 = vmatmul.mubr.f32.gmra.mrb[0].mxu0 %v164
  %v269 = vpop.f32.mrb[0].mxu0
  %v270 = vadd.f32 %v191, %v269
  %v271 = vpop.f32.mrb[0].mxu0
  %272 = vmatprep.mubr.f32.mxu0 0.0
  %273 = vmatmul.mubr.f32.gmra.mrb[0].mxu0 %v165
  %v274 = vpop.f32.mrb[0].mxu0
  %v275 = vadd.f32 %v191, %v274
  %v276 = vpop.f32.mrb[0].mxu0
  %277 = vmatprep.mubr.f32.mxu0 0.0
  %278 = vmatmul.mubr.f32.gmra.mrb[0].mxu0 %v166
  %v279 = vpop.f32.mrb[0].mxu0
  %v280 = vadd.f32 %v191, %v279
  %v281 = vpop.f32.mrb[0].mxu0
  %282 = vmatprep.mubr.f32.mxu0 0.0
  %283 = vmatmul.mubr.f32.gmra.mrb[0].mxu0 %v167
  %v284 = vpop.f32.mrb[0].mxu0
  %v285 = vadd.f32 %v191, %v284
  %v286 = vpop.f32.mrb[0].mxu0
  %287 = vmatprep.mubr.f32.mxu0 0.0
  %288 = vmatmul.mubr.f32.gmra.mrb[0].mxu0 %v168
  %v289 = vpop.f32.mrb[0].mxu0
  %v290 = vadd.f32 %v191, %v289
  %v291 = vpop.f32.mrb[0].mxu0
  %292 = vmatprep.mubr.f32.mxu0 0.0
  %293 = vmatmul.mubr.f32.gmra.mrb[0].mxu0 %v169
  %v294 = vpop.f32.mrb[0].mxu0
  %v295 = vadd.f32 %v191, %v294
  %v296 = vpop.f32.mrb[0].mxu0
  %297 = vdwg.mxu0
  %v298 = vmax.f32 %v260, 0.0
  %v299 = vmax.f32 %v265, 0.0
  %v300 = vmax.f32 %v270, 0.0
  %v301 = vmax.f32 %v275, 0.0
  %v302 = vmax.f32 %v280, 0.0
  %v303 = vmax.f32 %v285, 0.0
  %v304 = vmax.f32 %v290, 0.0
  %v305 = vmax.f32 %v295, 0.0
  %v306 = vld [vmem:[%s5] sm:$0xff]
  %v307 = vld [vmem:[%s5 + $0x8] sm:$0xff]
  %v308 = vld [vmem:[%s5 + $0x10] sm:$0xff]
  %v309 = vld [vmem:[%s5 + $0x18] sm:$0xff]
  %v310 = vld [vmem:[%s5 + $0x20] sm:$0xff]
  %v311 = vld [vmem:[%s5 + $0x28] sm:$0xff]
  %v312 = vld [vmem:[%s5 + $0x30] sm:$0xff]
  %v313 = vld [vmem:[%s5 + $0x38] sm:$0xff]
  %v314 = vld [vmem:[%s5 + $0x40] sm:$0xff]
  %v315 = vld [vmem:[%s5 + $0x48] sm:$0xff]
  %v316 = vld [vmem:[%s5 + $0x50] sm:$0xff]
  %v317 = vld [vmem:[%s5 + $0x58] sm:$0xff]
  %v318 = vld [vmem:[%s5 + $0x60] sm:$0xff]
  %v319 = vld [vmem:[%s5 + $0x68] sm:$0xff]
  %v320 = vld [vmem:[%s5 + $0x70] sm:$0xff]
  %v321 = vld [vmem:[%s5 + $0x78] sm:$0xff]
  %v322 = vld [vmem:[%s6] sm:$0x1]
  %v324 = vlaneseq
  %v325 = vshrl.u32 %v324, 7
  %v326 = vsub.s32 0, %v325
  %v327 = vrot.slane %v322, %v326
  %329 = vmatprep.subr.mxu0 0.0
  %330 = vmatpush1.msra.mxu0 %v306
  %331 = vmatprep.subr.mxu0 0.0
  %332 = vmatpush1.msra.mxu0 %v307
  %333 = vmatprep.subr.mxu0 0.0
  %334 = vmatpush1.msra.mxu0 %v308
  %335 = vmatprep.subr.mxu0 0.0
  %336 = vmatpush1.msra.mxu0 %v309
  %337 = vmatprep.subr.mxu0 0.0
  %338 = vmatpush1.msra.mxu0 %v310
  %339 = vmatprep.subr.mxu0 0.0
  %340 = vmatpush1.msra.mxu0 %v311
  %341 = vmatprep.subr.mxu0 0.0
  %342 = vmatpush1.msra.mxu0 %v312
  %343 = vmatprep.subr.mxu0 0.0
  %344 = vmatpush1.msra.mxu0 %v313
  %345 = vmatprep.subr.mxu0 0.0
  %346 = vmatpush1.msra.mxu0 %v314
  %347 = vmatprep.subr.mxu0 0.0
  %348 = vmatpush1.msra.mxu0 %v315
  %349 = vmatprep.subr.mxu0 0.0
  %350 = vmatpush1.msra.mxu0 %v316
  %351 = vmatprep.subr.mxu0 0.0
  %352 = vmatpush1.msra.mxu0 %v317
  %353 = vmatprep.subr.mxu0 0.0
  %354 = vmatpush1.msra.mxu0 %v318
  %355 = vmatprep.subr.mxu0 0.0
  %356 = vmatpush1.msra.mxu0 %v319
  %357 = vmatprep.subr.mxu0 0.0
  %358 = vmatpush1.msra.mxu0 %v320
  %359 = vmatprep.subr.mxu0 0.0
  %360 = vmatpush1.msra.mxu0 %v321
  %361 = vmatprep.subr.mxu0 0.0
  %362 = vmatpush1.msra.mxu0 0.0
  %363 = vmatprep.subr.mxu0 0.0
  %364 = vmatpush1.msra.mxu0 0.0
  %365 = vmatprep.subr.mxu0 0.0
  %366 = vmatpush1.msra.mxu0 0.0
  %367 = vmatprep.subr.mxu0 0.0
  %368 = vmatpush1.msra.mxu0 0.0
  %369 = vmatprep.subr.mxu0 0.0
  %370 = vmatpush1.msra.mxu0 0.0
  %371 = vmatprep.subr.mxu0 0.0
  %372 = vmatpush1.msra.mxu0 0.0
  %373 = vmatprep.subr.mxu0 0.0
  %374 = vmatpush1.msra.mxu0 0.0
  %375 = vmatprep.subr.mxu0 0.0
  %376 = vmatpush1.msra.mxu0 0.0
  %377 = vmatprep.subr.mxu0 0.0
  %378 = vmatpush1.msra.mxu0 0.0
  %379 = vmatprep.subr.mxu0 0.0
  %380 = vmatpush1.msra.mxu0 0.0
  %381 = vmatprep.subr.mxu0 0.0
  %382 = vmatpush1.msra.mxu0 0.0
  %383 = vmatprep.subr.mxu0 0.0
  %384 = vmatpush1.msra.mxu0 0.0
  %385 = vmatprep.subr.mxu0 0.0
  %386 = vmatpush1.msra.mxu0 0.0
  %387 = vmatprep.subr.mxu0 0.0
  %388 = vmatpush1.msra.mxu0 0.0
  %389 = vmatprep.subr.mxu0 0.0
  %390 = vmatpush1.msra.mxu0 0.0
  %391 = vmatprep.subr.mxu0 0.0
  %392 = vmatpush1.msra.mxu0 0.0
  %393 = vmatprep.mubr.f32.mxu0 0.0
  %394 = vmatmul.mubr.f32.gmra.mrb[0].mxu0 %v298
  %v395 = vpop.f32.mrb[0].mxu0
  %v396 = vadd.f32 %v327, %v395
  %v397 = vpop.f32.mrb[0].mxu0
  %398 = vmatprep.mubr.f32.mxu0 0.0
  %399 = vmatmul.mubr.f32.gmra.mrb[0].mxu0 %v299
  %v400 = vpop.f32.mrb[0].mxu0
  %v401 = vadd.f32 %v327, %v400
  %v402 = vpop.f32.mrb[0].mxu0
  %403 = vmatprep.mubr.f32.mxu0 0.0
  %404 = vmatmul.mubr.f32.gmra.mrb[0].mxu0 %v300
  %v405 = vpop.f32.mrb[0].mxu0
  %v406 = vadd.f32 %v327, %v405
  %v407 = vpop.f32.mrb[0].mxu0
  %408 = vmatprep.mubr.f32.mxu0 0.0
  %409 = vmatmul.mubr.f32.gmra.mrb[0].mxu0 %v301
  %v410 = vpop.f32.mrb[0].mxu0
  %v411 = vadd.f32 %v327, %v410
  %v412 = vpop.f32.mrb[0].mxu0
  %413 = vmatprep.mubr.f32.mxu0 0.0
  %414 = vmatmul.mubr.f32.gmra.mrb[0].mxu0 %v302
  %v415 = vpop.f32.mrb[0].mxu0
  %v416 = vadd.f32 %v327, %v415
  %v417 = vpop.f32.mrb[0].mxu0
  %418 = vmatprep.mubr.f32.mxu0 0.0
  %419 = vmatmul.mubr.f32.gmra.mrb[0].mxu0 %v303
  %v420 = vpop.f32.mrb[0].mxu0
  %v421 = vadd.f32 %v327, %v420
  %v422 = vpop.f32.mrb[0].mxu0
  %423 = vmatprep.mubr.f32.mxu0 0.0
  %424 = vmatmul.mubr.f32.gmra.mrb[0].mxu0 %v304
  %v425 = vpop.f32.mrb[0].mxu0
  %v426 = vadd.f32 %v327, %v425
  %v427 = vpop.f32.mrb[0].mxu0
  %428 = vmatprep.mubr.f32.mxu0 0.0
  %429 = vmatmul.mubr.f32.gmra.mrb[0].mxu0 %v305
  %v430 = vpop.f32.mrb[0].mxu0
  %v431 = vadd.f32 %v327, %v430
  %v432 = vpop.f32.mrb[0].mxu0
  %433 = vdwg.mxu0
  %434 = vst [vmem:[%s7] sm:$0xff] %v396
  %435 = vst [vmem:[%s7 + $0x8] sm:$0xff] %v401
  %436 = vst [vmem:[%s7 + $0x10] sm:$0xff] %v406
  %437 = vst [vmem:[%s7 + $0x18] sm:$0xff] %v411
  %438 = vst [vmem:[%s7 + $0x20] sm:$0xff] %v416
  %439 = vst [vmem:[%s7 + $0x28] sm:$0xff] %v421
  %440 = vst [vmem:[%s7 + $0x30] sm:$0xff] %v426
  %441 = vst [vmem:[%s7 + $0x38] sm:$0xff] %v431
  // Predicated region
  $region30: #{mlp_forward.1} parent=0 // pred_check
    _
  $region31: #{mlp_forward.1} parent=0 // pred_check_branch
    %443 = sbr.rel (0) target = $region33
  $region32: #{mlp_forward.1} parent=0 // pred_region
    _
  $region33: #{mlp_forward.1} parent=0 // pred_fallthru
    _
  // Predicated region
  $region34: #{mlp_forward.1} parent=0 // pred_check
    _
  $region35: #{mlp_forward.1} parent=0 // pred_check_branch
    %445 = sbr.rel (0) target = $region37
  $region36: #{mlp_forward.1} parent=0 // pred_region
    _
  $region37: #{mlp_forward.1} parent=0 // pred_fallthru
    _

</llo_original>
